<compile_context>
chip_gen: v7x
topology: tpu7x:2x2x1
jax: 0.10.0
libtpu: 0.0.40
codegen_flags: <defaults>
</compile_context>

<pallas_src>
import jax
import jax.numpy as jnp
from jax.experimental import pallas as pl
from jax.experimental.pallas import tpu as pltpu


def _softmax_kernel(x_ref, o_ref):
    # Compute in f32 regardless of input dtype (accuracy + v5e has no bf16 VPU/EUP).
    x = x_ref[...].astype(jnp.float32)
    # Match torch exactly: plain exp (no max subtraction), reduce over classes (last axis).
    # TODO(synk): add row-max subtraction if numerical safety is ever preferred over
    #             exact parity with the given torch code.
    exp_x = jnp.exp(x)                                        # EUP
    denom = jnp.sum(exp_x, axis=-1, keepdims=True)            # f32 accumulation (XLU)
    inv = pl.reciprocal(denom, approx=False)                  # exact path (kernel is HBM-bound)
    o_ref[...] = (exp_x * inv).astype(o_ref.dtype)


def softmax(logits: jax.Array) -> jax.Array:
    """Softmax over dim=1 of a (batch_size, num_classes) array."""
    assert logits.ndim == 2, "expected (batch_size, num_classes)"
    B, C = logits.shape
    dtype = logits.dtype
    itemsize = jnp.dtype(dtype).itemsize

    # Sublane packing: 8 rows/vreg for 32-bit, 16 for 16-bit dtypes.
    sub = 8 if itemsize >= 4 else 16

    # --- Pick the batch tile TB (no padding; partial final block is masked). --------
    # Per-row VMEM footprint of one grid step:
    #   input block  (double-buffered): 2 * C * itemsize
    #   output block (double-buffered): 2 * C * itemsize
    #   f32 temporaries (x_f32, exp_x, + slack): ~3 * C * 4
    bytes_per_row = C * (4 * itemsize + 12)
    vmem_budget = 20 * 1024 * 1024          # stays comfortably under the 32 MiB scoped
    tb_cap = max(sub, (vmem_budget // bytes_per_row) // sub * sub)
    # TODO(synk): for very large C (e.g. vocab-size softmax) even TB=sub may not fit;
    #             that needs a two-pass class-tiled variant with an accumulator.

    if B > 4 * sub:
        # Enough rows to split: aim for >= MIN_STEPS grid steps so DMA/compute overlap
        # and (on v7x) both TensorCores get work via the "parallel" axis.
        MIN_STEPS = 8
        tb_steps = pl.cdiv(pl.cdiv(B, MIN_STEPS), sub) * sub  # round up to sublane multiple
        TB = max(sub, min(tb_cap, tb_steps))
    else:
        TB = min(B, tb_cap)                 # tiny batch: one block; full-dim shape is legal

    grid = (pl.cdiv(B, TB),)

    # TODO(synk): for tiny C (<= ~64) a lane-packing layout ((B, C) -> (B*C/128, 128)
    #             with a strided-roll tree reduction) would recover ~4x store bandwidth.
    out = pl.pallas_call(
        _softmax_kernel,
        out_shape=jax.ShapeDtypeStruct((B, C), dtype),
        grid=grid,
        in_specs=[pl.BlockSpec((TB, C), lambda i: (i, 0))],
        out_specs=pl.BlockSpec((TB, C), lambda i: (i, 0)),
        compiler_params=pltpu.CompilerParams(
            dimension_semantics=("parallel",),   # rows independent -> shard over TCs
            vmem_limit_bytes=32 * 1024 * 1024,   # > v5e's 16 MiB default, safe on v7x
        ),
        cost_estimate=pl.CostEstimate(
            flops=2 * B * C,
            transcendentals=B * C,
            bytes_accessed=2 * B * C * itemsize,
        ),
    )(logits)
    return out


def _reference(logits):
    exp_l = jnp.exp(logits.astype(jnp.float32))
    return (exp_l / jnp.sum(exp_l, axis=1, keepdims=True)).astype(logits.dtype)


if __name__ == "__main__":
    key = jax.random.PRNGKey(0)

    # Primary test: matches the module's documented interface (batch, num_classes).
    batch_size, num_classes = 8, 32
    logits = jax.random.normal(key, (batch_size, num_classes), dtype=jnp.float32)

    probs = jax.block_until_ready(softmax(logits))
    ref = _reference(logits)
    assert jnp.allclose(probs, ref, atol=1e-6, rtol=1e-6), "mismatch vs reference"
    assert jnp.allclose(jnp.sum(probs, axis=1), 1.0, atol=1e-5), "rows must sum to 1"

    # Secondary check: exercises the multi-step grid with a partial final batch block
    # (300 % 40 != 0) and a non-128-multiple class axis (160) with masked stores.
    logits2 = jax.random.normal(jax.random.PRNGKey(0), (300, 160), dtype=jnp.float32)
    probs2 = jax.block_until_ready(softmax(logits2))
    ref2 = _reference(logits2)
    assert jnp.allclose(probs2, ref2, atol=1e-6, rtol=1e-5), "mismatch vs reference (tiled path)"

    print("KERNEL_OK")
</pallas_src>

<mosaic_0001>
module attributes {stable_mosaic.version = 11 : i64} {
  func.func @_softmax_kernel(%arg0: i32, %arg1: memref<8x32xf32, #tpu.memory_space<vmem>>, %arg2: memref<8x32xf32, #tpu.memory_space<vmem>>) attributes {dimension_semantics = [#tpu.dimension_semantics<parallel>], iteration_bounds = array<i64: 1>, scalar_prefetch = 0 : i64, scratch_operands = 0 : i64, tpu.core_type = #tpu.core_type<tc>, window_params = [{transform_indices = @transform_0, window_bounds = array<i64: 8, 32>}, {transform_indices = @transform_1, window_bounds = array<i64: 8, 32>}]} {
    %c0 = arith.constant 0 : index
    %c0_0 = arith.constant 0 : index
    %0 = vector.load %arg1[%c0, %c0_0] : memref<8x32xf32, #tpu.memory_space<vmem>>, vector<8x32xf32>
    %1 = math.exp %0 : vector<8x32xf32>
    %cst = arith.constant dense<0.000000e+00> : vector<8xf32>
    %2 = vector.multi_reduction <add>, %1, %cst [1] : vector<8x32xf32> to vector<8xf32>
    %3 = vector.shape_cast %2 : vector<8xf32> to vector<8x1xf32>
    %4 = tpu.reciprocal %3 : vector<8x1xf32> -> vector<8x1xf32>
    %5 = vector.broadcast %4 : vector<8x1xf32> to vector<8x32xf32>
    %6 = arith.mulf %1, %5 : vector<8x32xf32>
    %c0_1 = arith.constant 0 : index
    %c0_2 = arith.constant 0 : index
    %7 = vector.load %arg2[%c0_1, %c0_2] : memref<8x32xf32, #tpu.memory_space<vmem>>, vector<8x32xf32>
    tpu.vector_store %arg2[%c0_1, %c0_2], %6 {strides = array<i32>} : memref<8x32xf32, #tpu.memory_space<vmem>>, vector<8x32xf32>,
    return
  }
  func.func @transform_0(%arg0: i32) -> (i32, i32) {
    %c0_i32 = arith.constant 0 : i32
    %c0_i32_0 = arith.constant 0 : i32
    return %arg0, %c0_i32 : i32, i32
  }
  func.func @transform_1(%arg0: i32) -> (i32, i32) {
    %c0_i32 = arith.constant 0 : i32
    %c0_i32_0 = arith.constant 0 : i32
    return %arg0, %c0_i32 : i32, i32
  }
}

</mosaic_0001>

<llo_original>
// kernel: tpu_custom_call.1
$region0: #{tpu_custom_call.1}
  #allocation0 [shape = 'u32[]', space=smem, size = 0x4, offset = 0x4, fixed_abs, tag = 'smem constant byte address 0x4 - core index']
  #allocation1 [shape = 'u32[144,128]{1,0:T(1,128)}', space=vmem, size = 0x12000, scoped, tag = 'internal scratch']
  %s0 = inlined_call_operand.hbm [shape: f32[8,32], index: 0, kind: input, shape index: {}]
  %s1 = inlined_call_operand.hbm [shape: f32[8,32], index: 1, kind: output, shape index: {}]
  %s2 = sld [smem:[#allocation0]]
  $region18: #{tpu_custom_call.1} parent=0
    _
  %s4 = ssub.s32 1, %s2
  %s5 = scalar_select 0, %s4, %s2
  $region1: #{tpu_custom_call.1} parent=0
    #allocation2 [shape = 'u8[4096]{0}', space=vmem, size = 0x1000, scoped, tag = 'input window, operand 0, single buffered']
    #allocation3 [shape = 's32[1]{0}', space=sflag, size = 0x4, scoped, tag = 'scoped memory for tpu_custom_call.1']
    #allocation4 [shape = 's32[1]{0}', space=sflag, size = 0x4, scoped, tag = 'scoped memory for tpu_custom_call.1']
    #allocation5 [shape = 'u8[4096]{0}', space=vmem, size = 0x1000, scoped, tag = 'output window, operand 0, single buffered']
    %6 = vsyncpa [#allocation3], 0
    %7 = vsyncpa [#allocation4], 0
    // Predicated region
    $region2: #{tpu_custom_call.1} parent=1 // pred_check
      _
    $region3: #{tpu_custom_call.1} parent=1 // pred_check_branch
      %9 = sbr.rel (0) target = $region5
    $region4: #{tpu_custom_call.1} parent=1 // pred_region
      %s11 = ssub.s32 128, 128
      %12 = vsyncadd [#allocation3], %s11
      %s14 = sshll.u32 [#allocation2], 4
      %s15 = int_to_ptr.vmem [resolvable:$true] %s14
      %17 = dma.hbm_to_vmem [thread:$0]  %s0, 128, %s15, [#allocation3]
    $region5: #{tpu_custom_call.1} parent=1 // pred_fallthru
      _
    // Predicated region
    $region6: #{tpu_custom_call.1} parent=1 // pred_check
      _
    $region7: #{tpu_custom_call.1} parent=1 // pred_check_branch
      %19 = sbr.rel (0) target = $region9
    $region8: #{tpu_custom_call.1} parent=1 // pred_region
      %20 = dma.done [#allocation3], 128
    $region9: #{tpu_custom_call.1} parent=1 // pred_fallthru
      _
    %v21 = vld [vmem:[#allocation2] sm:$0xff]
    %v22 = vmul.f32 %v21, 1.442695
    %v23 = vpow.pop %v22
    %vm24 = vcmask 261120
    %v25 = vsel %vm24, %v23, 0.0
    %26 = vadd.xlane.f32.xlu0 %v25
    %v27 = vpop.xlane.xlu0 %26
    %v28 = vrcp.pop %v27
    %v29 = vmul.f32 %v23, %v28
    %30 = vst.msk [vmem:[#allocation5] sm:$0xff] %vm24, %v29
    // Predicated region
    $region10: #{tpu_custom_call.1} parent=1 // pred_check
      _
    $region11: #{tpu_custom_call.1} parent=1 // pred_check_branch
      %32 = sbr.rel (0) target = $region13
    $region12: #{tpu_custom_call.1} parent=1 // pred_region
      %s34 = ssub.s32 128, 128
      %35 = vsyncadd [#allocation4], %s34
      %s37 = sshll.u32 [#allocation5], 4
      %s38 = int_to_ptr.vmem [resolvable:$true] %s37
      %40 = dma.vmem_to_hbm [thread:$0]  %s38, 128, %s1, [#allocation4]
    $region13: #{tpu_custom_call.1} parent=1 // pred_fallthru
      _
    // Predicated region
    $region14: #{tpu_custom_call.1} parent=1 // pred_check
      _
    $region15: #{tpu_custom_call.1} parent=1 // pred_check_branch
      %42 = sbr.rel (0) target = $region17
    $region16: #{tpu_custom_call.1} parent=1 // pred_region
      %43 = dma.done [#allocation4], 128
    $region17: #{tpu_custom_call.1} parent=1 // pred_fallthru
      _
    %44 = vsyncpa [#allocation3], 1
    %45 = vsyncpa [#allocation4], 1

</llo_original>
